<compile_context>
chip_gen: v7x
topology: tpu7x:2x2x1
jax: 0.10.0
libtpu: 0.0.40
codegen_flags: <defaults>
</compile_context>

<pallas_src>
import functools

import jax
import jax.numpy as jnp
from jax.experimental import pallas as pl
from jax.experimental.pallas import tpu as pltpu

HIDDEN = 64      # real hidden width of the module
HP = 128         # padded hidden width (fills 128-lane vregs / MXU tile)
OP = 128         # padded output width used *inside* the kernel only
ALIGN = 16       # sublane multiple for bf16 operands
NEG_INF = -1e30


def _round_up(a, m):
    return (a + m - 1) // m * m


def dqn_mlp_kernel(x_ref, w1_ref, w2_ref, w3_ref, out_ref, *, out_size):
    # x_ref: (tm, Dp) bf16 with a ones column at index D (carries the biases).
    x = x_ref[...]

    # Three pure bf16 matmuls with f32 accumulation; biases ride in the packed
    # weight rows via the ones lane (kept alive at column HP-1 of h1 / h2).
    h1 = jnp.maximum(
        jnp.dot(x, w1_ref[...], preferred_element_type=jnp.float32), 0.0)
    h2 = jnp.maximum(
        jnp.dot(h1.astype(jnp.bfloat16), w2_ref[...],
                preferred_element_type=jnp.float32), 0.0)
    q = jnp.dot(h2.astype(jnp.bfloat16), w3_ref[...],
                preferred_element_type=jnp.float32)          # (tm, OP) f32

    # Fused greedy-action selection over the real action columns (first-max
    # tie-break), built from lane max/min reductions + iota.
    lane = jax.lax.broadcasted_iota(jnp.int32, q.shape, 1)
    valid = lane < out_size
    q_m = jnp.where(valid, q, NEG_INF)
    q_max = jnp.max(q_m, axis=-1, keepdims=True)
    idx_f = jnp.where((q_m >= q_max) & valid, lane.astype(jnp.float32), float(OP))
    act_f = jnp.min(idx_f, axis=-1, keepdims=True)           # (tm, 1), small ints

    # Narrow lane slab: real Q-values in columns [0, out_size), greedy action
    # in column out_size (small ints are exact in f32), zeros elsewhere.
    packed = jnp.where(valid, q, 0.0)
    packed = jnp.where(lane == out_size, act_f, packed)
    out_ref[...] = packed[:, :out_ref.shape[-1]].astype(out_ref.dtype)


def pack_dqn_params(params):
    """Fold biases into the weights, zero-pad to lane-dense shapes, cast bf16.

    With x augmented by a ones column at index D, each layer is a single matmul:
        h1 = relu(x_aug @ w1p)   -> columns [0,64) real, column 127 == 1
        h2 = relu(h1    @ w2p)   -> columns [0,64) real, column 127 == 1
        q  =       h2   @ w3p    -> columns [0,out_size) real
    """
    w1, b1 = params["w1"], params["b1"].reshape(-1)   # (D, H), (H,)
    w2, b2 = params["w2"], params["b2"].reshape(-1)   # (H, H), (H,)
    w3, b3 = params["w3"], params["b3"].reshape(-1)   # (H, O), (O,)
    D, H = w1.shape
    O = w3.shape[1]
    assert H < HP and O < OP       # need spare columns for the ones lane / action
    Dp = _round_up(D + 1, ALIGN)   # input + ones lane, bf16-sublane aligned

    w1p = jnp.zeros((Dp, HP), jnp.float32)
    w1p = w1p.at[:D, :H].set(w1)
    w1p = w1p.at[D, :H].set(b1)            # bias row, picked up by x's ones column
    w1p = w1p.at[D, HP - 1].set(1.0)       # keep a ones lane alive in h1

    w2p = jnp.zeros((HP, HP), jnp.float32)
    w2p = w2p.at[:H, :H].set(w2)
    w2p = w2p.at[HP - 1, :H].set(b2)       # bias row, picked up by h1's ones lane
    w2p = w2p.at[HP - 1, HP - 1].set(1.0)  # ones lane survives into h2

    w3p = jnp.zeros((HP, OP), jnp.float32)
    w3p = w3p.at[:H, :O].set(w3)
    w3p = w3p.at[HP - 1, :O].set(b3)       # bias row for the output layer

    return {"w1p": w1p.astype(jnp.bfloat16),
            "w2p": w2p.astype(jnp.bfloat16),
            "w3p": w3p.astype(jnp.bfloat16),
            "input_size": D, "output_size": O,
            "q_cols": _round_up(O + 1, 8)}


def dqn_forward(x, packed, *, max_batch_tile=256):
    """x: (B, input_size) float32. Returns (q_values (B, output_size), greedy_actions (B,))."""
    B, D = x.shape
    assert D == packed["input_size"]
    O = packed["output_size"]
    Dp = packed["w1p"].shape[0]
    QO = packed["q_cols"]                 # narrow output width (>= O + 1, mult of 8)

    # Batch tiling: 128-256 rows keeps the (tm, 128) intermediates out of spill
    # territory; for big batches force >= 2 grid steps so both v7x TCs work.
    B_a = _round_up(B, ALIGN)
    tm = min(max_batch_tile, B_a)
    if B_a >= 256:
        tm = min(tm, _round_up((B_a + 1) // 2, ALIGN))
    B_pad = _round_up(B_a, tm)
    nb = B_pad // tm

    # Augment x with the ones lane (carries biases), zero-pad, cast to bf16.
    x_pad = jnp.zeros((B_pad, Dp), jnp.bfloat16)
    x_pad = x_pad.at[:B, :D].set(x.astype(jnp.bfloat16))
    x_pad = x_pad.at[:, D].set(jnp.bfloat16(1.0))

    kernel = functools.partial(dqn_mlp_kernel, out_size=O)

    flops = 2 * B_pad * (Dp * HP + HP * HP + HP * OP)
    bytes_accessed = (x_pad.size * 2
                      + (packed["w1p"].size + packed["w2p"].size
                         + packed["w3p"].size) * 2
                      + B_pad * QO * 4)

    out = pl.pallas_call(
        kernel,
        out_shape=jax.ShapeDtypeStruct((B_pad, QO), jnp.float32),
        grid_spec=pltpu.PrefetchScalarGridSpec(
            num_scalar_prefetch=0,
            grid=(nb,),
            in_specs=[
                pl.BlockSpec((tm, Dp), lambda i: (i, 0)),
                # Constant block index -> weights stay VMEM-resident across steps.
                pl.BlockSpec((Dp, HP), lambda i: (0, 0)),
                pl.BlockSpec((HP, HP), lambda i: (0, 0)),
                pl.BlockSpec((HP, OP), lambda i: (0, 0)),
            ],
            out_specs=pl.BlockSpec((tm, QO), lambda i: (i, 0)),
        ),
        compiler_params=pltpu.CompilerParams(
            dimension_semantics=("parallel",)),
        cost_estimate=pl.CostEstimate(
            flops=flops, transcendentals=0, bytes_accessed=bytes_accessed),
    )(x_pad, packed["w1p"], packed["w2p"], packed["w3p"])

    q = out[:B, :O]
    actions = out[:B, O].astype(jnp.int32)
    return q, actions


def init_dqn_params(key, input_size, output_size, hidden=HIDDEN):
    """PyTorch nn.Linear default init (U[-1/sqrt(fan_in), 1/sqrt(fan_in)]).
    Weights stored as (in, out); biases as (1, out)."""
    ks = jax.random.split(key, 6)

    def lin(kw, kb, fan_in, fan_out):
        bound = 1.0 / jnp.sqrt(jnp.float32(fan_in))
        w = jax.random.uniform(kw, (fan_in, fan_out), jnp.float32, -bound, bound)
        b = jax.random.uniform(kb, (1, fan_out), jnp.float32, -bound, bound)
        return w, b

    w1, b1 = lin(ks[0], ks[1], input_size, hidden)
    w2, b2 = lin(ks[2], ks[3], hidden, hidden)
    w3, b3 = lin(ks[4], ks[5], hidden, output_size)
    return {"w1": w1, "b1": b1, "w2": w2, "b2": b2, "w3": w3, "b3": b3}


if __name__ == "__main__":
    # Acrobot-v1: observation dim 6, action dim 3.
    input_size, output_size, batch = 6, 3, 8

    key = jax.random.PRNGKey(0)
    k_params, k_x = jax.random.split(key)
    params = init_dqn_params(k_params, input_size, output_size)
    x = jax.random.normal(k_x, (batch, input_size), jnp.float32)

    packed = pack_dqn_params(params)            # one-time prep: fold biases, pad, bf16
    q, actions = dqn_forward(x, packed)
    q = jax.block_until_ready(q)
    actions = jax.block_until_ready(actions)

    # Pure-JAX f32 reference of the same math. The kernel runs bf16 weights /
    # activations with f32 accumulation, so compare with a loose tolerance.
    def ref(x, p):
        h1 = jnp.maximum(x @ p["w1"] + p["b1"], 0.0)
        h2 = jnp.maximum(h1 @ p["w2"] + p["b2"], 0.0)
        return h2 @ p["w3"] + p["b3"]

    expected = ref(x, params)
    assert q.shape == (batch, output_size)
    assert actions.shape == (batch,)
    assert jnp.allclose(q, expected, atol=5e-2, rtol=5e-2)
    # Fused greedy action must match the argmax of the kernel's own Q-values.
    assert jnp.array_equal(actions, jnp.argmax(q, axis=-1).astype(jnp.int32))

    print("KERNEL_OK")
</pallas_src>

<mosaic_0001>
module attributes {stable_mosaic.version = 11 : i64} {
  func.func @dqn_mlp_kernel(%arg0: i32, %arg1: memref<16x16xbf16, #tpu.memory_space<vmem>>, %arg2: memref<16x128xbf16, #tpu.memory_space<vmem>>, %arg3: memref<128x128xbf16, #tpu.memory_space<vmem>>, %arg4: memref<128x128xbf16, #tpu.memory_space<vmem>>, %arg5: memref<16x8xf32, #tpu.memory_space<vmem>>) attributes {dimension_semantics = [#tpu.dimension_semantics<parallel>], iteration_bounds = array<i64: 1>, scalar_prefetch = 0 : i64, scratch_operands = 0 : i64, tpu.core_type = #tpu.core_type<tc>, window_params = [{transform_indices = @transform_0, window_bounds = array<i64: 16, 16>}, {pipeline_mode = #tpu.pipeline_mode<synchronous>, transform_indices = @transform_1, window_bounds = array<i64: 16, 128>}, {pipeline_mode = #tpu.pipeline_mode<synchronous>, transform_indices = @transform_2, window_bounds = array<i64: 128, 128>}, {pipeline_mode = #tpu.pipeline_mode<synchronous>, transform_indices = @transform_3, window_bounds = array<i64: 128, 128>}, {transform_indices = @transform_4, window_bounds = array<i64: 16, 8>}]} {
    %c0 = arith.constant 0 : index
    %c0_0 = arith.constant 0 : index
    %0 = vector.load %arg1[%c0, %c0_0] : memref<16x16xbf16, #tpu.memory_space<vmem>>, vector<16x16xbf16>
    %c0_1 = arith.constant 0 : index
    %c0_2 = arith.constant 0 : index
    %1 = vector.load %arg2[%c0_1, %c0_2] : memref<16x128xbf16, #tpu.memory_space<vmem>>, vector<16x128xbf16>
    %cst = arith.constant dense<0.000000e+00> : vector<16x128xf32>
    %2 = tpu.matmul %0, %1, %cst {dimension_numbers = #tpu.dot_dimension_numbers<[1], [0], [0], [1], [0, 0, 1, 1], [], []>} : vector<16x16xbf16>, vector<16x128xbf16>, vector<16x128xf32> -> vector<16x128xf32>
    %cst_3 = arith.constant 0.000000e+00 : f32
    %3 = vector.broadcast %cst_3 : f32 to vector<16x128xf32>
    %4 = arith.maximumf %2, %3 : vector<16x128xf32>
    %5 = arith.truncf %4 : vector<16x128xf32> to vector<16x128xbf16>
    %c0_4 = arith.constant 0 : index
    %c0_5 = arith.constant 0 : index
    %6 = vector.load %arg3[%c0_4, %c0_5] : memref<128x128xbf16, #tpu.memory_space<vmem>>, vector<128x128xbf16>
    %cst_6 = arith.constant dense<0.000000e+00> : vector<16x128xf32>
    %7 = tpu.matmul %5, %6, %cst_6 {dimension_numbers = #tpu.dot_dimension_numbers<[1], [0], [0], [1], [0, 0, 1, 1], [], []>} : vector<16x128xbf16>, vector<128x128xbf16>, vector<16x128xf32> -> vector<16x128xf32>
    %cst_7 = arith.constant 0.000000e+00 : f32
    %8 = vector.broadcast %cst_7 : f32 to vector<16x128xf32>
    %9 = arith.maximumf %7, %8 : vector<16x128xf32>
    %10 = arith.truncf %9 : vector<16x128xf32> to vector<16x128xbf16>
    %c0_8 = arith.constant 0 : index
    %c0_9 = arith.constant 0 : index
    %11 = vector.load %arg4[%c0_8, %c0_9] : memref<128x128xbf16, #tpu.memory_space<vmem>>, vector<128x128xbf16>
    %cst_10 = arith.constant dense<0.000000e+00> : vector<16x128xf32>
    %12 = tpu.matmul %10, %11, %cst_10 {dimension_numbers = #tpu.dot_dimension_numbers<[1], [0], [0], [1], [0, 0, 1, 1], [], []>} : vector<16x128xbf16>, vector<128x128xbf16>, vector<16x128xf32> -> vector<16x128xf32>
    %13 = tpu.iota {dimensions = array<i32: 1>} : vector<16x128xi32>
    %c3_i32 = arith.constant 3 : i32
    %14 = vector.broadcast %c3_i32 : i32 to vector<16x128xi32>
    %15 = arith.cmpi slt, %13, %14 : vector<16x128xi32>
    %cst_11 = arith.constant -1.000000e+30 : f32
    %16 = vector.broadcast %cst_11 : f32 to vector<16x128xf32>
    %17 = arith.select %15, %12, %16 : vector<16x128xi1>, vector<16x128xf32>
    %cst_12 = arith.constant dense<0xFF800000> : vector<16xf32>
    %18 = vector.multi_reduction <maximumf>, %17, %cst_12 [1] : vector<16x128xf32> to vector<16xf32>
    %19 = vector.shape_cast %18 : vector<16xf32> to vector<16x1xf32>
    %20 = vector.broadcast %19 : vector<16x1xf32> to vector<16x128xf32>
    %21 = arith.cmpf oge, %17, %20 : vector<16x128xf32>
    %22 = arith.andi %21, %15 : vector<16x128xi1>
    %23 = arith.sitofp %13 : vector<16x128xi32> to vector<16x128xf32>
    %cst_13 = arith.constant 1.280000e+02 : f32
    %24 = vector.broadcast %cst_13 : f32 to vector<16x128xf32>
    %25 = arith.select %22, %23, %24 : vector<16x128xi1>, vector<16x128xf32>
    %cst_14 = arith.constant dense<0x7F800000> : vector<16xf32>
    %26 = vector.multi_reduction <minimumf>, %25, %cst_14 [1] : vector<16x128xf32> to vector<16xf32>
    %27 = vector.shape_cast %26 : vector<16xf32> to vector<16x1xf32>
    %cst_15 = arith.constant 0.000000e+00 : f32
    %28 = vector.broadcast %cst_15 : f32 to vector<16x128xf32>
    %29 = arith.select %15, %12, %28 : vector<16x128xi1>, vector<16x128xf32>
    %c3_i32_16 = arith.constant 3 : i32
    %30 = vector.broadcast %c3_i32_16 : i32 to vector<16x128xi32>
    %31 = arith.cmpi eq, %13, %30 : vector<16x128xi32>
    %32 = vector.shape_cast %27 : vector<16x1xf32> to vector<16x1xf32>
    %33 = vector.broadcast %32 : vector<16x1xf32> to vector<16x128xf32>
    %34 = arith.select %31, %33, %29 : vector<16x128xi1>, vector<16x128xf32>
    %35 = vector.extract_strided_slice %34 {offsets = [0, 0], sizes = [16, 8], strides = [1, 1]} : vector<16x128xf32> to vector<16x8xf32>
    %c0_17 = arith.constant 0 : index
    %c0_18 = arith.constant 0 : index
    %36 = vector.load %arg5[%c0_17, %c0_18] : memref<16x8xf32, #tpu.memory_space<vmem>>, vector<16x8xf32>
    tpu.vector_store %arg5[%c0_17, %c0_18], %35 {strides = array<i32>} : memref<16x8xf32, #tpu.memory_space<vmem>>, vector<16x8xf32>,
    return
  }
  func.func @transform_0(%arg0: i32) -> (i32, i32) {
    %c0_i32 = arith.constant 0 : i32
    %c0_i32_0 = arith.constant 0 : i32
    return %arg0, %c0_i32 : i32, i32
  }
  func.func @transform_1(%arg0: i32) -> (i32, i32) {
    %c0_i32 = arith.constant 0 : i32
    %c0_i32_0 = arith.constant 0 : i32
    %c0_i32_1 = arith.constant 0 : i32
    return %c0_i32, %c0_i32_0 : i32, i32
  }
  func.func @transform_2(%arg0: i32) -> (i32, i32) {
    %c0_i32 = arith.constant 0 : i32
    %c0_i32_0 = arith.constant 0 : i32
    %c0_i32_1 = arith.constant 0 : i32
    return %c0_i32, %c0_i32_0 : i32, i32
  }
  func.func @transform_3(%arg0: i32) -> (i32, i32) {
    %c0_i32 = arith.constant 0 : i32
    %c0_i32_0 = arith.constant 0 : i32
    %c0_i32_1 = arith.constant 0 : i32
    return %c0_i32, %c0_i32_0 : i32, i32
  }
  func.func @transform_4(%arg0: i32) -> (i32, i32) {
    %c0_i32 = arith.constant 0 : i32
    %c0_i32_0 = arith.constant 0 : i32
    return %arg0, %c0_i32 : i32, i32
  }
}

</mosaic_0001>

<llo_original>
// kernel: tpu_custom_call.1
$region0: #{tpu_custom_call.1}
  #allocation0 [shape = 'u32[]', space=smem, size = 0x4, offset = 0x4, fixed_abs, tag = 'smem constant byte address 0x4 - core index']
  #allocation1 [shape = 'u32[144,128]{1,0:T(1,128)}', space=vmem, size = 0x12000, scoped, tag = 'internal scratch']
  %s0 = inlined_call_operand.hbm [shape: bf16[16,16], index: 0, kind: input, shape index: {}]
  %s1 = inlined_call_operand.hbm [shape: bf16[16,128], index: 1, kind: input, shape index: {}]
  %s2 = inlined_call_operand.hbm [shape: bf16[128,128], index: 2, kind: input, shape index: {}]
  %s3 = inlined_call_operand.hbm [shape: bf16[128,128], index: 3, kind: input, shape index: {}]
  %s4 = inlined_call_operand.vmem [shape: f32[16,8], index: 4, kind: output, shape index: {}]
  %s5 = sld [smem:[#allocation0]]
  $region42: #{tpu_custom_call.1} parent=0
    _
  %s7 = ssub.s32 1, %s5
  %s8 = scalar_select 0, %s7, %s5
  $region1: #{tpu_custom_call.1} parent=0
    #allocation2 [shape = 'u8[4096]{0}', space=vmem, size = 0x1000, scoped, tag = 'input window, operand 0, single buffered']
    #allocation3 [shape = 's32[1]{0}', space=sflag, size = 0x4, scoped, tag = 'scoped memory for tpu_custom_call.1']
    #allocation4 [shape = 'u8[4096]{0}', space=vmem, size = 0x1000, scoped, tag = 'input window, operand 1, single buffered']
    #allocation5 [shape = 's32[1]{0}', space=sflag, size = 0x4, scoped, tag = 'scoped memory for tpu_custom_call.1']
    #allocation6 [shape = 'u8[32768]{0}', space=vmem, size = 0x8000, scoped, tag = 'input window, operand 2, single buffered']
    #allocation7 [shape = 'u8[32768]{0}', space=vmem, size = 0x8000, scoped, tag = 'input window, operand 3, single buffered']
    #allocation8 [shape = 's32[1]{0}', space=sflag, size = 0x4, scoped, tag = 'scoped memory for tpu_custom_call.1']
    %9 = vsyncpa [#allocation3], 0
    %10 = vsyncpa [#allocation5], 0
    %11 = vsyncpa [#allocation8], 0
    // Predicated region
    $region2: #{tpu_custom_call.1} parent=1 // pred_check
      _
    $region3: #{tpu_custom_call.1} parent=1 // pred_check_branch
      %13 = sbr.rel (0) target = $region5
    $region4: #{tpu_custom_call.1} parent=1 // pred_region
      %s15 = ssub.s32 128, 128
      %16 = vsyncadd [#allocation3], %s15
      %s17 = sshll.u32 [#allocation2], 4
      %s18 = int_to_ptr.vmem [resolvable:$true] %s17
      %23 = dma.hbm_to_vmem [thread:$0]  %s0, 128, %s18, [#allocation3], 64, 64, 4
    $region5: #{tpu_custom_call.1} parent=1 // pred_fallthru
      _
    // Predicated region
    $region6: #{tpu_custom_call.1} parent=1 // pred_check
      _
    $region7: #{tpu_custom_call.1} parent=1 // pred_check_branch
      %25 = sbr.rel (0) target = $region9
    $region8: #{tpu_custom_call.1} parent=1 // pred_region
      %s27 = ssub.s32 128, 128
      %28 = vsyncadd [#allocation5], %s27
      %s29 = sshll.u32 [#allocation4], 4
      %s30 = int_to_ptr.vmem [resolvable:$true] %s29
      %35 = dma.hbm_to_vmem [thread:$0]  %s1, 128, %s30, [#allocation5], 64, 64, 4
    $region9: #{tpu_custom_call.1} parent=1 // pred_fallthru
      _
    // Predicated region
    $region10: #{tpu_custom_call.1} parent=1 // pred_check
      _
    $region11: #{tpu_custom_call.1} parent=1 // pred_check_branch
      %37 = sbr.rel (0) target = $region13
    $region12: #{tpu_custom_call.1} parent=1 // pred_region
      %s39 = ssub.s32 1024, 1024
      %40 = vsyncadd [#allocation5], %s39
      %s41 = sshll.u32 [#allocation6], 4
      %s42 = int_to_ptr.vmem [resolvable:$true] %s41
      %47 = dma.hbm_to_vmem [thread:$0]  %s2, 1024, %s42, [#allocation5], 64, 64, 4
    $region13: #{tpu_custom_call.1} parent=1 // pred_fallthru
      _
    // Predicated region
    $region14: #{tpu_custom_call.1} parent=1 // pred_check
      _
    $region15: #{tpu_custom_call.1} parent=1 // pred_check_branch
      %49 = sbr.rel (0) target = $region17
    $region16: #{tpu_custom_call.1} parent=1 // pred_region
      %s51 = ssub.s32 1024, 1024
      %52 = vsyncadd [#allocation8], %s51
      %s53 = sshll.u32 [#allocation7], 4
      %s54 = int_to_ptr.vmem [resolvable:$true] %s53
      %59 = dma.hbm_to_vmem [thread:$0]  %s3, 1024, %s54, [#allocation8], 64, 64, 4
    $region17: #{tpu_custom_call.1} parent=1 // pred_fallthru
      _
    // Predicated region
    $region18: #{tpu_custom_call.1} parent=1 // pred_check
      _
    $region19: #{tpu_custom_call.1} parent=1 // pred_check_branch
      %61 = sbr.rel (0) target = $region21
    $region20: #{tpu_custom_call.1} parent=1 // pred_region
      %62 = dma.done [#allocation3], 128
    $region21: #{tpu_custom_call.1} parent=1 // pred_fallthru
      _
    // Predicated region
    $region22: #{tpu_custom_call.1} parent=1 // pred_check
      _
    $region23: #{tpu_custom_call.1} parent=1 // pred_check_branch
      %64 = sbr.rel (0) target = $region25
    $region24: #{tpu_custom_call.1} parent=1 // pred_region
      %65 = dma.done [#allocation5], 128
    $region25: #{tpu_custom_call.1} parent=1 // pred_fallthru
      _
    // Predicated region
    $region26: #{tpu_custom_call.1} parent=1 // pred_check
      _
    $region27: #{tpu_custom_call.1} parent=1 // pred_check_branch
      %67 = sbr.rel (0) target = $region29
    $region28: #{tpu_custom_call.1} parent=1 // pred_region
      %68 = dma.done [#allocation5], 1024
    $region29: #{tpu_custom_call.1} parent=1 // pred_fallthru
      _
    // Predicated region
    $region30: #{tpu_custom_call.1} parent=1 // pred_check
      _
    $region31: #{tpu_custom_call.1} parent=1 // pred_check_branch
      %70 = sbr.rel (0) target = $region33
    $region32: #{tpu_custom_call.1} parent=1 // pred_region
      %71 = dma.done [#allocation8], 1024
    $region33: #{tpu_custom_call.1} parent=1 // pred_fallthru
      _
    %v73 = vld [vmem:[#allocation2] sm:$0xf]
    %v74 = vld [vmem:[#allocation2 + $0x4] sm:$0xf]
    %v75 = vld [vmem:[#allocation4] sm:$0xf]
    %v76 = vld [vmem:[#allocation4 + $0x4] sm:$0xf]
    %v79 = vunpack.c.l.b16 %v73
    %v80 = vunpack.c.l.b16 %v74
    %v81 = vpack.c.b16 %v80, %v79
    %v84 = vunpack.c.l.b16 %v75
    %v85 = vunpack.c.l.b16 %v76
    %v86 = vpack.c.b16 %v85, %v84
    %vm88 = vcmask 130048
    %v90 = vsel %vm88, %v81, 0
    %92 = vmatprep.subr.bf16.mxu0 0
    %93 = vmatpush1.bf16.msra.mxu0 %v86
    %94 = vmatprep.subr.bf16.mxu0 0
    %95 = vmatpush1.bf16.msra.mxu0 0
    %96 = vmatprep.subr.bf16.mxu0 0
    %97 = vmatpush1.bf16.msra.mxu0 0
    %98 = vmatprep.subr.bf16.mxu0 0
    %99 = vmatpush1.bf16.msra.mxu0 0
    %100 = vmatprep.subr.bf16.mxu0 0
    %101 = vmatpush1.bf16.msra.mxu0 0
    %102 = vmatprep.subr.bf16.mxu0 0
    %103 = vmatpush1.bf16.msra.mxu0 0
    %104 = vmatprep.subr.bf16.mxu0 0
    %105 = vmatpush1.bf16.msra.mxu0 0
    %106 = vmatprep.subr.bf16.mxu0 0
    %107 = vmatpush1.bf16.msra.mxu0 0
    %108 = vmatprep.subr.bf16.mxu0 0
    %109 = vmatpush1.bf16.msra.mxu0 0
    %110 = vmatprep.subr.bf16.mxu0 0
    %111 = vmatpush1.bf16.msra.mxu0 0
    %112 = vmatprep.subr.bf16.mxu0 0
    %113 = vmatpush1.bf16.msra.mxu0 0
    %114 = vmatprep.subr.bf16.mxu0 0
    %115 = vmatpush1.bf16.msra.mxu0 0
    %116 = vmatprep.subr.bf16.mxu0 0
    %117 = vmatpush1.bf16.msra.mxu0 0
    %118 = vmatprep.subr.bf16.mxu0 0
    %119 = vmatpush1.bf16.msra.mxu0 0
    %120 = vmatprep.subr.bf16.mxu0 0
    %121 = vmatpush1.bf16.msra.mxu0 0
    %122 = vmatprep.subr.bf16.mxu0 0
    %123 = vmatpush1.bf16.msra.mxu0 0
    %124 = vmatprep.mubr.bf16.mxu0 0
    %125 = vmatmul.mubr.bf16.gmra.mrb[0].mxu0 %v90
    %v126 = vpop.f32.mrb[0].mxu0
    %v127 = vadd.f32 0.0, %v126
    %v128 = vpop.f32.mrb[0].mxu0
    %v129 = vpop.f32.mrb[0].mxu0
    %v130 = vadd.f32 0.0, %v129
    %v131 = vpop.f32.mrb[0].mxu0
    %132 = vdwg.mxu0
    %v133 = vmax.f32 %v127, 0.0
    %v134 = vmax.f32 %v130, 0.0
    %v135 = vpack.c.bf16 %v134, %v133
    %v136 = vld [vmem:[#allocation6] sm:$0xf]
    %v137 = vld [vmem:[#allocation6 + $0x4] sm:$0xf]
    %v138 = vld [vmem:[#allocation6 + $0x8] sm:$0xf]
    %v139 = vld [vmem:[#allocation6 + $0xc] sm:$0xf]
    %v140 = vld [vmem:[#allocation6 + $0x10] sm:$0xf]
    %v141 = vld [vmem:[#allocation6 + $0x14] sm:$0xf]
    %v142 = vld [vmem:[#allocation6 + $0x18] sm:$0xf]
    %v143 = vld [vmem:[#allocation6 + $0x1c] sm:$0xf]
    %v144 = vld [vmem:[#allocation6 + $0x20] sm:$0xf]
    %v145 = vld [vmem:[#allocation6 + $0x24] sm:$0xf]
    %v146 = vld [vmem:[#allocation6 + $0x28] sm:$0xf]
    %v147 = vld [vmem:[#allocation6 + $0x2c] sm:$0xf]
    %v148 = vld [vmem:[#allocation6 + $0x30] sm:$0xf]
    %v149 = vld [vmem:[#allocation6 + $0x34] sm:$0xf]
    %v150 = vld [vmem:[#allocation6 + $0x38] sm:$0xf]
    %v151 = vld [vmem:[#allocation6 + $0x3c] sm:$0xf]
    %v168 = vunpack.c.l.b16 %v136
    %v169 = vunpack.c.l.b16 %v137
    %v170 = vunpack.c.l.b16 %v138
    %v171 = vunpack.c.l.b16 %v139
    %v172 = vunpack.c.l.b16 %v140
    %v173 = vunpack.c.l.b16 %v141
    %v174 = vunpack.c.l.b16 %v142
    %v175 = vunpack.c.l.b16 %v143
    %v176 = vunpack.c.l.b16 %v144
    %v177 = vunpack.c.l.b16 %v145
    %v178 = vunpack.c.l.b16 %v146
    %v179 = vunpack.c.l.b16 %v147
    %v180 = vunpack.c.l.b16 %v148
    %v181 = vunpack.c.l.b16 %v149
    %v182 = vunpack.c.l.b16 %v150
    %v183 = vunpack.c.l.b16 %v151
    %v184 = vpack.c.b16 %v169, %v168
    %v185 = vpack.c.b16 %v171, %v170
    %v186 = vpack.c.b16 %v173, %v172
    %v187 = vpack.c.b16 %v175, %v174
    %v188 = vpack.c.b16 %v177, %v176
    %v189 = vpack.c.b16 %v179, %v178
    %v190 = vpack.c.b16 %v181, %v180
    %v191 = vpack.c.b16 %v183, %v182
    %200 = vmatprep.subr.bf16.mxu0 0
    %201 = vmatpush1.bf16.msra.mxu0 %v184
    %202 = vmatprep.subr.bf16.mxu0 0
    %203 = vmatpush1.bf16.msra.mxu0 %v185
    %204 = vmatprep.subr.bf16.mxu0 0
    %205 = vmatpush1.bf16.msra.mxu0 %v186
    %206 = vmatprep.subr.bf16.mxu0 0
    %207 = vmatpush1.bf16.msra.mxu0 %v187
    %208 = vmatprep.subr.bf16.mxu0 0
    %209 = vmatpush1.bf16.msra.mxu0 %v188
    %210 = vmatprep.subr.bf16.mxu0 0
    %211 = vmatpush1.bf16.msra.mxu0 %v189
    %212 = vmatprep.subr.bf16.mxu0 0
    %213 = vmatpush1.bf16.msra.mxu0 %v190
    %214 = vmatprep.subr.bf16.mxu0 0
    %215 = vmatpush1.bf16.msra.mxu0 %v191
    %216 = vmatprep.subr.bf16.mxu0 0
    %217 = vmatpush1.bf16.msra.mxu0 0
    %218 = vmatprep.subr.bf16.mxu0 0
    %219 = vmatpush1.bf16.msra.mxu0 0
    %220 = vmatprep.subr.bf16.mxu0 0
    %221 = vmatpush1.bf16.msra.mxu0 0
    %222 = vmatprep.subr.bf16.mxu0 0
    %223 = vmatpush1.bf16.msra.mxu0 0
    %224 = vmatprep.subr.bf16.mxu0 0
    %225 = vmatpush1.bf16.msra.mxu0 0
    %226 = vmatprep.subr.bf16.mxu0 0
    %227 = vmatpush1.bf16.msra.mxu0 0
    %228 = vmatprep.subr.bf16.mxu0 0
    %229 = vmatpush1.bf16.msra.mxu0 0
    %230 = vmatprep.subr.bf16.mxu0 0
    %231 = vmatpush1.bf16.msra.mxu0 0
    %232 = vmatprep.mubr.bf16.mxu0 0
    %233 = vmatmul.mubr.bf16.gmra.mrb[0].mxu0 %v135
    %v234 = vpop.f32.mrb[0].mxu0
    %v235 = vadd.f32 0.0, %v234
    %v236 = vpop.f32.mrb[0].mxu0
    %v237 = vpop.f32.mrb[0].mxu0
    %v238 = vadd.f32 0.0, %v237
    %v239 = vpop.f32.mrb[0].mxu0
    %240 = vdwg.mxu0
    %v241 = vmax.f32 %v235, 0.0
    %v242 = vmax.f32 %v238, 0.0
    %v243 = vpack.c.bf16 %v242, %v241
    %v244 = vld [vmem:[#allocation7] sm:$0xf]
    %v245 = vld [vmem:[#allocation7 + $0x4] sm:$0xf]
    %v246 = vld [vmem:[#allocation7 + $0x8] sm:$0xf]
    %v247 = vld [vmem:[#allocation7 + $0xc] sm:$0xf]
    %v248 = vld [vmem:[#allocation7 + $0x10] sm:$0xf]
    %v249 = vld [vmem:[#allocation7 + $0x14] sm:$0xf]
    %v250 = vld [vmem:[#allocation7 + $0x18] sm:$0xf]
    %v251 = vld [vmem:[#allocation7 + $0x1c] sm:$0xf]
    %v252 = vld [vmem:[#allocation7 + $0x20] sm:$0xf]
    %v253 = vld [vmem:[#allocation7 + $0x24] sm:$0xf]
    %v254 = vld [vmem:[#allocation7 + $0x28] sm:$0xf]
    %v255 = vld [vmem:[#allocation7 + $0x2c] sm:$0xf]
    %v256 = vld [vmem:[#allocation7 + $0x30] sm:$0xf]
    %v257 = vld [vmem:[#allocation7 + $0x34] sm:$0xf]
    %v258 = vld [vmem:[#allocation7 + $0x38] sm:$0xf]
    %v259 = vld [vmem:[#allocation7 + $0x3c] sm:$0xf]
    %v276 = vunpack.c.l.b16 %v244
    %v277 = vunpack.c.l.b16 %v245
    %v278 = vunpack.c.l.b16 %v246
    %v279 = vunpack.c.l.b16 %v247
    %v280 = vunpack.c.l.b16 %v248
    %v281 = vunpack.c.l.b16 %v249
    %v282 = vunpack.c.l.b16 %v250
    %v283 = vunpack.c.l.b16 %v251
    %v284 = vunpack.c.l.b16 %v252
    %v285 = vunpack.c.l.b16 %v253
    %v286 = vunpack.c.l.b16 %v254
    %v287 = vunpack.c.l.b16 %v255
    %v288 = vunpack.c.l.b16 %v256
    %v289 = vunpack.c.l.b16 %v257
    %v290 = vunpack.c.l.b16 %v258
    %v291 = vunpack.c.l.b16 %v259
    %v292 = vpack.c.b16 %v277, %v276
    %v293 = vpack.c.b16 %v279, %v278
    %v294 = vpack.c.b16 %v281, %v280
    %v295 = vpack.c.b16 %v283, %v282
    %v296 = vpack.c.b16 %v285, %v284
    %v297 = vpack.c.b16 %v287, %v286
    %v298 = vpack.c.b16 %v289, %v288
    %v299 = vpack.c.b16 %v291, %v290
    %308 = vmatprep.subr.bf16.mxu0 0
    %309 = vmatpush1.bf16.msra.mxu0 %v292
    %310 = vmatprep.subr.bf16.mxu0 0
    %311 = vmatpush1.bf16.msra.mxu0 %v293
    %312 = vmatprep.subr.bf16.mxu0 0
    %313 = vmatpush1.bf16.msra.mxu0 %v294
    %314 = vmatprep.subr.bf16.mxu0 0
    %315 = vmatpush1.bf16.msra.mxu0 %v295
    %316 = vmatprep.subr.bf16.mxu0 0
    %317 = vmatpush1.bf16.msra.mxu0 %v296
    %318 = vmatprep.subr.bf16.mxu0 0
    %319 = vmatpush1.bf16.msra.mxu0 %v297
    %320 = vmatprep.subr.bf16.mxu0 0
    %321 = vmatpush1.bf16.msra.mxu0 %v298
    %322 = vmatprep.subr.bf16.mxu0 0
    %323 = vmatpush1.bf16.msra.mxu0 %v299
    %324 = vmatprep.subr.bf16.mxu0 0
    %325 = vmatpush1.bf16.msra.mxu0 0
    %326 = vmatprep.subr.bf16.mxu0 0
    %327 = vmatpush1.bf16.msra.mxu0 0
    %328 = vmatprep.subr.bf16.mxu0 0
    %329 = vmatpush1.bf16.msra.mxu0 0
    %330 = vmatprep.subr.bf16.mxu0 0
    %331 = vmatpush1.bf16.msra.mxu0 0
    %332 = vmatprep.subr.bf16.mxu0 0
    %333 = vmatpush1.bf16.msra.mxu0 0
    %334 = vmatprep.subr.bf16.mxu0 0
    %335 = vmatpush1.bf16.msra.mxu0 0
    %336 = vmatprep.subr.bf16.mxu0 0
    %337 = vmatpush1.bf16.msra.mxu0 0
    %338 = vmatprep.subr.bf16.mxu0 0
    %339 = vmatpush1.bf16.msra.mxu0 0
    %340 = vmatprep.mubr.bf16.mxu0 0
    %341 = vmatmul.mubr.bf16.gmra.mrb[0].mxu0 %v243
    %v342 = vpop.f32.mrb[0].mxu0
    %v343 = vadd.f32 0.0, %v342
    %v344 = vpop.f32.mrb[0].mxu0
    %v345 = vpop.f32.mrb[0].mxu0
    %v346 = vadd.f32 0.0, %v345
    %v347 = vpop.f32.mrb[0].mxu0
    %348 = vdwg.mxu0
    %v349 = vlaneseq
    %v350 = vand.u32 %v349, 127
    %vm351 = vcmp.lt.s32.totalorder %v350, 3
    %v352 = vsel %vm351, %v343, -1e+30
    %v353 = vsel %vm351, %v346, -1e+30
    %354 = vmax.xlane.f32.xlu0 %v352
    %v355 = vpop.xlane.xlu0 %354
    %356 = vmax.xlane.f32.xlu0 %v353
    %v357 = vpop.xlane.xlu0 %356
    %vm358 = vcmp.ge.f32.partialorder %v352, %v355
    %vm359 = vcmp.ge.f32.partialorder %v353, %v357
    %vm360 = vmand %vm358, %vm351
    %vm361 = vmand %vm359, %vm351
    %v362 = vcvt.s32.f32 %v350
    %v363 = vsel %vm360, %v362, 128.0
    %v364 = vsel %vm361, %v362, 128.0
    %365 = vmin.xlane.f32.xlu0 %v363
    %v366 = vpop.xlane.xlu0 %365
    %367 = vmin.xlane.f32.xlu0 %v364
    %v368 = vpop.xlane.xlu0 %367
    %v369 = vsel %vm351, %v343, 0.0
    %v370 = vsel %vm351, %v346, 0.0
    %vm371 = vcmp.eq.s32.totalorder %v350, 3
    %v372 = vsel %vm371, %v366, %v369
    %v373 = vsel %vm371, %v368, %v370
    %vm374 = vcmask 64512
    %375 = vst.msk [vmem:[%s4] sm:$0xff] %vm374, %v372
    %376 = vst.msk [vmem:[%s4 + $0x8] sm:$0xff] %vm374, %v373
    // Predicated region
    $region34: #{tpu_custom_call.1} parent=1 // pred_check
      _
    $region35: #{tpu_custom_call.1} parent=1 // pred_check_branch
      %378 = sbr.rel (0) target = $region37
    $region36: #{tpu_custom_call.1} parent=1 // pred_region
      _
    $region37: #{tpu_custom_call.1} parent=1 // pred_fallthru
      _
    // Predicated region
    $region38: #{tpu_custom_call.1} parent=1 // pred_check
      _
    $region39: #{tpu_custom_call.1} parent=1 // pred_check_branch
      %380 = sbr.rel (0) target = $region41
    $region40: #{tpu_custom_call.1} parent=1 // pred_region
      _
    $region41: #{tpu_custom_call.1} parent=1 // pred_fallthru
      _
    %381 = vsyncpa [#allocation3], 1
    %382 = vsyncpa [#allocation5], 1
    %383 = vsyncpa [#allocation8], 1

</llo_original>
